<compile_context>
chip_gen: v7x
topology: tpu7x:2x2x1
jax: 0.10.0
libtpu: 0.0.40
codegen_flags: <defaults>
</compile_context>

<pallas_src>
import jax
import jax.numpy as jnp
from jax.experimental import pallas as pl
from jax.experimental.pallas import tpu as pltpu

LANE = 128          # TPU vreg lane width (last-dim tiling unit)
ROW_ALIGN = 16      # bf16 packs 2 rows per sublane -> keep row tiles %16 == 0
MAX_TB = 1024       # max batch-tile rows (bf16 x tile = 1 MiB)


def _round_up(x, m):
    return ((x + m - 1) // m) * m


def _linear_kernel(x_ref, w_ref, b_ref, o_ref):
    # One batch tile: y = x @ w + b.  bf16 inputs, f32 MXU accumulation.
    # Single K block -> bias is added exactly once per output tile (would need
    # a pl.when guard on the reduction index if a K grid axis were added).
    o_ref[...] = (
        jnp.dot(x_ref[...], w_ref[...], preferred_element_type=jnp.float32)
        + b_ref[...]
    ).astype(o_ref.dtype)


def prepare_linear_params(weight, bias, compute_dtype=jnp.bfloat16):
    """One-time parameter prep (model-init time, NOT per forward call).

    Transposes the PyTorch (N, K) Linear weight to (K, N), pads N up to a full
    128-lane tile so every output store is lane-dense, and casts the resident
    weight to the streaming compute dtype (bf16).  Bias stays f32 (added to
    the f32 accumulator).
    """
    n, k = weight.shape
    n_pad = _round_up(n, LANE)
    w_t = jnp.zeros((k, n_pad), compute_dtype).at[:, :n].set(
        weight.T.astype(compute_dtype))
    b2d = jnp.zeros((1, n_pad), jnp.float32).at[0, :n].set(
        bias.astype(jnp.float32))
    return w_t, b2d


def _choose_batch_tile(batch):
    """Row-tile size: multiple of 16 (bf16 sublane pack), capped at MAX_TB,
    and — when the batch spans several tiles — with an even tile count so the
    parallel grid splits evenly across v7x's two TensorCores."""
    if batch <= MAX_TB:
        return _round_up(batch, ROW_ALIGN)
    n_tiles = pl.cdiv(batch, MAX_TB)
    if n_tiles % 2:
        n_tiles += 1
    return _round_up(pl.cdiv(batch, n_tiles), ROW_ALIGN)


def cnn3d_model_forward(x, w_t_padded, b_padded, num_classes):
    """Forward pass of CNN3DModel.

    x:           (B, C, D, H, W) -- non-batch dims must flatten to 512
    w_t_padded:  (512, Np) bf16  from prepare_linear_params (Np = 128-padded N)
    b_padded:    (1, Np)   f32   from prepare_linear_params
    returns      (B, num_classes) float32
    """
    B = x.shape[0]
    x_flat = x.reshape(B, -1)               # x.view(x.size(0), -1)
    K = x_flat.shape[1]
    Np = w_t_padded.shape[1]
    assert K == w_t_padded.shape[0], "flattened feature dim must equal 512"

    # Stream the activation in the same dtype as the resident weight (bf16).
    # This halves the kernel's x read traffic (the op is HBM-bound).  In a
    # real model, produce x in bf16 upstream so this convert fuses with the
    # producer instead of being a separate pass over x.
    compute_dtype = w_t_padded.dtype
    x_flat = x_flat.astype(compute_dtype)

    tb = _choose_batch_tile(B)
    n_tiles = pl.cdiv(B, tb)

    if n_tiles == 1:
        # Tiny-batch path: one VMEM-resident tile, no grid / pipelining
        # machinery.  (For B <= ~64 a plain XLA dot fused with the upstream
        # producer would beat any standalone custom call; kept as Pallas here
        # so this kernel is the single code path.)
        out = pl.pallas_call(
            _linear_kernel,
            out_shape=jax.ShapeDtypeStruct((B, Np), jnp.float32),
            in_specs=[
                pl.BlockSpec(memory_space=pltpu.MemorySpace.VMEM),
                pl.BlockSpec(memory_space=pltpu.MemorySpace.VMEM),
                pl.BlockSpec(memory_space=pltpu.MemorySpace.VMEM),
            ],
            out_specs=pl.BlockSpec(memory_space=pltpu.MemorySpace.VMEM),
        )(x_flat, w_t_padded, b_padded)
    else:
        # Batch-tiled path: auto double-buffered HBM->VMEM pipeline over B.
        # Grid uses a non-dividing final block instead of padding the whole
        # array in HBM: OOB rows of the last tile are undefined, which is safe
        # because the op is strictly row-wise and only rows [0, B) exist in
        # the output.  Weight/bias index_maps return (0, 0) so they stay
        # VMEM-resident across grid steps.
        out = pl.pallas_call(
            _linear_kernel,
            out_shape=jax.ShapeDtypeStruct((B, Np), jnp.float32),
            grid_spec=pl.GridSpec(
                grid=(n_tiles,),
                in_specs=[
                    pl.BlockSpec((tb, K), lambda i: (i, 0)),
                    pl.BlockSpec((K, Np), lambda i: (0, 0)),   # resident
                    pl.BlockSpec((1, Np), lambda i: (0, 0)),   # resident
                ],
                out_specs=pl.BlockSpec((tb, Np), lambda i: (i, 0)),
            ),
            compiler_params=pltpu.CompilerParams(
                # Batch axis is independent -> shard across v7x's 2 TCs.
                dimension_semantics=("parallel",),
            ),
        )(x_flat, w_t_padded, b_padded)

    return out[:, :num_classes]


def reference_forward(x, weight, bias):
    x_flat = x.reshape(x.shape[0], -1).astype(jnp.float32)
    return x_flat @ weight.T.astype(jnp.float32) + bias.astype(jnp.float32)


if __name__ == "__main__":
    num_classes = 2

    key = jax.random.PRNGKey(0)
    k_x, k_w, k_b = jax.random.split(key, 3)

    # Input consistent with the module: flattening non-batch dims gives 512.
    # (B=2, C=8, D=4, H=4, W=4) -> 8*4*4*4 = 512 features.
    x = jax.random.normal(k_x, (2, 8, 4, 4, 4), dtype=jnp.float32)

    # Deterministic synthetic parameters (PyTorch Linear: W (N, 512), b (N,)).
    bound = 1.0 / (512.0 ** 0.5)
    weight = jax.random.uniform(k_w, (num_classes, 512), jnp.float32, -bound, bound)
    bias = jax.random.uniform(k_b, (num_classes,), jnp.float32, -bound, bound)

    # One-time param prep (transpose + lane-pad + bf16 cast) — model-init time.
    w_t_padded, b_padded = prepare_linear_params(weight, bias)

    # --- tiny-batch (no-grid) path ---
    y = cnn3d_model_forward(x, w_t_padded, b_padded, num_classes)
    y = jax.block_until_ready(y)
    y_ref = reference_forward(x, weight, bias)
    assert y.shape == (2, num_classes)
    # bf16 inputs / f32 accumulation -> loosened tolerance vs. f32 reference.
    assert jnp.allclose(y, y_ref, atol=3e-2, rtol=3e-2), "tiny-batch mismatch"

    # --- batch-tiled path: non-multiple batch exercises the non-dividing
    # final block and the even (2-tile) parallel grid split. ---
    xb = jax.random.normal(k_x, (1030, 8, 4, 4, 4), dtype=jnp.float32)
    yb = cnn3d_model_forward(xb, w_t_padded, b_padded, num_classes)
    yb = jax.block_until_ready(yb)
    yb_ref = reference_forward(xb, weight, bias)
    assert yb.shape == (1030, num_classes)
    assert jnp.allclose(yb, yb_ref, atol=3e-2, rtol=3e-2), "tiled-batch mismatch"

    # TODO(synk): optionally emit bf16 output (another ~10% traffic cut) if the
    # consumer accepts bf16 logits; kept f32 here for exact downstream use.
    print("KERNEL_OK")
</pallas_src>

<mosaic_0001>
module attributes {stable_mosaic.version = 11 : i64} {
  func.func @_linear_kernel(%arg0: memref<2x512xbf16, #tpu.memory_space<vmem>>, %arg1: memref<512x128xbf16, #tpu.memory_space<vmem>>, %arg2: memref<1x128xf32, #tpu.memory_space<vmem>>, %arg3: memref<2x128xf32, #tpu.memory_space<vmem>>) attributes {dimension_semantics = [], scalar_prefetch = 0 : i64, scratch_operands = 0 : i64, tpu.core_type = #tpu.core_type<tc>} {
    %c0 = arith.constant 0 : index
    %c0_0 = arith.constant 0 : index
    %0 = vector.load %arg0[%c0, %c0_0] : memref<2x512xbf16, #tpu.memory_space<vmem>>, vector<2x512xbf16>
    %c0_1 = arith.constant 0 : index
    %c0_2 = arith.constant 0 : index
    %1 = vector.load %arg1[%c0_1, %c0_2] : memref<512x128xbf16, #tpu.memory_space<vmem>>, vector<512x128xbf16>
    %cst = arith.constant dense<0.000000e+00> : vector<2x128xf32>
    %2 = tpu.matmul %0, %1, %cst {dimension_numbers = #tpu.dot_dimension_numbers<[1], [0], [0], [1], [0, 0, 1, 1], [], []>} : vector<2x512xbf16>, vector<512x128xbf16>, vector<2x128xf32> -> vector<2x128xf32>
    %c0_3 = arith.constant 0 : index
    %c0_4 = arith.constant 0 : index
    %3 = vector.load %arg2[%c0_3, %c0_4] : memref<1x128xf32, #tpu.memory_space<vmem>>, vector<1x128xf32>
    %4 = vector.broadcast %3 : vector<1x128xf32> to vector<2x128xf32>
    %5 = arith.addf %2, %4 : vector<2x128xf32>
    %c0_5 = arith.constant 0 : index
    %c0_6 = arith.constant 0 : index
    %6 = vector.load %arg3[%c0_5, %c0_6] : memref<2x128xf32, #tpu.memory_space<vmem>>, vector<2x128xf32>
    tpu.vector_store %arg3[%c0_5, %c0_6], %5 {strides = array<i32>} : memref<2x128xf32, #tpu.memory_space<vmem>>, vector<2x128xf32>,
    return
  }
}

</mosaic_0001>

<llo_original>
// kernel: tpu_custom_call.1
$region0: #{tpu_custom_call.1}
  #allocation0 [shape = 'u32[]', space=smem, size = 0x4, offset = 0x4, fixed_abs, tag = 'smem constant byte address 0x4 - core index']
  #allocation1 [shape = 'u32[144,128]{1,0:T(1,128)}', space=vmem, size = 0x12000, scoped, tag = 'internal scratch']
  %s0 = inlined_call_operand.hbm [shape: bf16[2,512], index: 0, kind: input, shape index: {}]
  %s1 = inlined_call_operand.hbm [shape: bf16[512,128], index: 1, kind: input, shape index: {}]
  %s2 = inlined_call_operand.vmem [shape: f32[1,128], index: 2, kind: input, shape index: {}]
  %s3 = inlined_call_operand.hbm [shape: f32[2,128], index: 3, kind: output, shape index: {}]
  %s4 = sld [smem:[#allocation0]]
  $region30: #{tpu_custom_call.1} parent=0
    _
  %s6 = ssub.s32 1, %s4
  %s7 = scalar_select 0, %s6, %s4
  $region1: #{tpu_custom_call.1} parent=0
    #allocation2 [shape = 'u8[2048]{0}', space=vmem, size = 0x800, scoped, tag = 'input window, operand 0, single buffered']
    #allocation3 [shape = 's32[1]{0}', space=sflag, size = 0x4, scoped, tag = 'scoped memory for tpu_custom_call.1']
    #allocation4 [shape = 's32[1]{0}', space=sflag, size = 0x4, scoped, tag = 'scoped memory for tpu_custom_call.1']
    #allocation5 [shape = 'u8[131072]{0}', space=vmem, size = 0x20000, scoped, tag = 'input window, operand 1, single buffered']
    #allocation6 [shape = 's32[1]{0}', space=sflag, size = 0x4, scoped, tag = 'scoped memory for tpu_custom_call.1']
    #allocation7 [shape = 'u8[1024]{0}', space=vmem, size = 0x400, scoped, tag = 'output window, operand 0, single buffered']
    %8 = vsyncpa [#allocation3], 0
    %9 = vsyncpa [#allocation6], 0
    %10 = vsyncpa [#allocation4], 0
    // Predicated region
    $region2: #{tpu_custom_call.1} parent=1 // pred_check
      _
    $region3: #{tpu_custom_call.1} parent=1 // pred_check_branch
      %12 = sbr.rel (0) target = $region5
    $region4: #{tpu_custom_call.1} parent=1 // pred_region
      %s14 = ssub.s32 64, 64
      %15 = vsyncadd [#allocation3], %s14
      %s17 = sshll.u32 [#allocation2], 4
      %s18 = int_to_ptr.vmem [resolvable:$true] %s17
      %20 = dma.hbm_to_vmem [thread:$0]  %s0, 64, %s18, [#allocation3]
    $region5: #{tpu_custom_call.1} parent=1 // pred_fallthru
      _
    // Predicated region
    $region6: #{tpu_custom_call.1} parent=1 // pred_check
      _
    $region7: #{tpu_custom_call.1} parent=1 // pred_check_branch
      %22 = sbr.rel (0) target = $region9
    $region8: #{tpu_custom_call.1} parent=1 // pred_region
      %s24 = ssub.s32 4096, 4096
      %25 = vsyncadd [#allocation6], %s24
      %s26 = sshll.u32 [#allocation5], 4
      %s27 = int_to_ptr.vmem [resolvable:$true] %s26
      %32 = dma.hbm_to_vmem [thread:$0]  %s1, 4096, %s27, [#allocation6], 64, 64, 4
    $region9: #{tpu_custom_call.1} parent=1 // pred_fallthru
      _
    // Predicated region
    $region10: #{tpu_custom_call.1} parent=1 // pred_check
      _
    $region11: #{tpu_custom_call.1} parent=1 // pred_check_branch
      %34 = sbr.rel (0) target = $region13
    $region12: #{tpu_custom_call.1} parent=1 // pred_region
      _
    $region13: #{tpu_custom_call.1} parent=1 // pred_fallthru
      _
    // Predicated region
    $region14: #{tpu_custom_call.1} parent=1 // pred_check
      _
    $region15: #{tpu_custom_call.1} parent=1 // pred_check_branch
      %36 = sbr.rel (0) target = $region17
    $region16: #{tpu_custom_call.1} parent=1 // pred_region
      %37 = dma.done [#allocation3], 64
    $region17: #{tpu_custom_call.1} parent=1 // pred_fallthru
      _
    // Predicated region
    $region18: #{tpu_custom_call.1} parent=1 // pred_check
      _
    $region19: #{tpu_custom_call.1} parent=1 // pred_check_branch
      %39 = sbr.rel (0) target = $region21
    $region20: #{tpu_custom_call.1} parent=1 // pred_region
      %40 = dma.done [#allocation6], 4096
    $region21: #{tpu_custom_call.1} parent=1 // pred_fallthru
      _
    %v42 = vld [vmem:[#allocation2] sm:$0xf]
    %v43 = vld [vmem:[#allocation5] sm:$0xf]
    %v44 = vld [vmem:[#allocation5 + $0x4] sm:$0xf]
    %v45 = vld [vmem:[#allocation5 + $0x8] sm:$0xf]
    %v46 = vld [vmem:[#allocation5 + $0xc] sm:$0xf]
    %v47 = vld [vmem:[#allocation5 + $0x10] sm:$0xf]
    %v48 = vld [vmem:[#allocation5 + $0x14] sm:$0xf]
    %v49 = vld [vmem:[#allocation5 + $0x18] sm:$0xf]
    %v50 = vld [vmem:[#allocation5 + $0x1c] sm:$0xf]
    %v51 = vld [vmem:[#allocation5 + $0x20] sm:$0xf]
    %v52 = vld [vmem:[#allocation5 + $0x24] sm:$0xf]
    %v53 = vld [vmem:[#allocation5 + $0x28] sm:$0xf]
    %v54 = vld [vmem:[#allocation5 + $0x2c] sm:$0xf]
    %v55 = vld [vmem:[#allocation5 + $0x30] sm:$0xf]
    %v56 = vld [vmem:[#allocation5 + $0x34] sm:$0xf]
    %v57 = vld [vmem:[#allocation5 + $0x38] sm:$0xf]
    %v58 = vld [vmem:[#allocation5 + $0x3c] sm:$0xf]
    %v59 = vld [vmem:[#allocation5 + $0x40] sm:$0xf]
    %v60 = vld [vmem:[#allocation5 + $0x44] sm:$0xf]
    %v61 = vld [vmem:[#allocation5 + $0x48] sm:$0xf]
    %v62 = vld [vmem:[#allocation5 + $0x4c] sm:$0xf]
    %v63 = vld [vmem:[#allocation5 + $0x50] sm:$0xf]
    %v64 = vld [vmem:[#allocation5 + $0x54] sm:$0xf]
    %v65 = vld [vmem:[#allocation5 + $0x58] sm:$0xf]
    %v66 = vld [vmem:[#allocation5 + $0x5c] sm:$0xf]
    %v67 = vld [vmem:[#allocation5 + $0x60] sm:$0xf]
    %v68 = vld [vmem:[#allocation5 + $0x64] sm:$0xf]
    %v69 = vld [vmem:[#allocation5 + $0x68] sm:$0xf]
    %v70 = vld [vmem:[#allocation5 + $0x6c] sm:$0xf]
    %v71 = vld [vmem:[#allocation5 + $0x70] sm:$0xf]
    %v72 = vld [vmem:[#allocation5 + $0x74] sm:$0xf]
    %v73 = vld [vmem:[#allocation5 + $0x78] sm:$0xf]
    %v74 = vld [vmem:[#allocation5 + $0x7c] sm:$0xf]
    %v75 = vld [vmem:[#allocation5 + $0x80] sm:$0xf]
    %v76 = vld [vmem:[#allocation5 + $0x84] sm:$0xf]
    %v77 = vld [vmem:[#allocation5 + $0x88] sm:$0xf]
    %v78 = vld [vmem:[#allocation5 + $0x8c] sm:$0xf]
    %v79 = vld [vmem:[#allocation5 + $0x90] sm:$0xf]
    %v80 = vld [vmem:[#allocation5 + $0x94] sm:$0xf]
    %v81 = vld [vmem:[#allocation5 + $0x98] sm:$0xf]
    %v82 = vld [vmem:[#allocation5 + $0x9c] sm:$0xf]
    %v83 = vld [vmem:[#allocation5 + $0xa0] sm:$0xf]
    %v84 = vld [vmem:[#allocation5 + $0xa4] sm:$0xf]
    %v85 = vld [vmem:[#allocation5 + $0xa8] sm:$0xf]
    %v86 = vld [vmem:[#allocation5 + $0xac] sm:$0xf]
    %v87 = vld [vmem:[#allocation5 + $0xb0] sm:$0xf]
    %v88 = vld [vmem:[#allocation5 + $0xb4] sm:$0xf]
    %v89 = vld [vmem:[#allocation5 + $0xb8] sm:$0xf]
    %v90 = vld [vmem:[#allocation5 + $0xbc] sm:$0xf]
    %v91 = vld [vmem:[#allocation5 + $0xc0] sm:$0xf]
    %v92 = vld [vmem:[#allocation5 + $0xc4] sm:$0xf]
    %v93 = vld [vmem:[#allocation5 + $0xc8] sm:$0xf]
    %v94 = vld [vmem:[#allocation5 + $0xcc] sm:$0xf]
    %v95 = vld [vmem:[#allocation5 + $0xd0] sm:$0xf]
    %v96 = vld [vmem:[#allocation5 + $0xd4] sm:$0xf]
    %v97 = vld [vmem:[#allocation5 + $0xd8] sm:$0xf]
    %v98 = vld [vmem:[#allocation5 + $0xdc] sm:$0xf]
    %v99 = vld [vmem:[#allocation5 + $0xe0] sm:$0xf]
    %v100 = vld [vmem:[#allocation5 + $0xe4] sm:$0xf]
    %v101 = vld [vmem:[#allocation5 + $0xe8] sm:$0xf]
    %v102 = vld [vmem:[#allocation5 + $0xec] sm:$0xf]
    %v103 = vld [vmem:[#allocation5 + $0xf0] sm:$0xf]
    %v104 = vld [vmem:[#allocation5 + $0xf4] sm:$0xf]
    %v105 = vld [vmem:[#allocation5 + $0xf8] sm:$0xf]
    %v106 = vld [vmem:[#allocation5 + $0xfc] sm:$0xf]
    %v107 = vld [vmem:[%s2] sm:$0x1]
    %v109 = vlaneseq
    %v110 = vshrl.u32 %v109, 7
    %v111 = vsub.s32 0, %v110
    %v112 = vrot.slane %v107, %v111
    %v116 = vunpack.c.l.s4 1966171168
    %v117 = vunpack.c.0.s8 %v116
    %v118 = vlaneseq
    %v119 = vshrl.u32 %v118, 7
    %v120 = vsub.s32 %v117, %v119
    %v121 = vrot.slane %v42, %v120
    %v122 = vcombine.high %v121, %v121
    %v124 = vunpack.c.l.s4 1966171168
    %v125 = vunpack.c.0.s8 %v124
    %v126 = vlaneseq
    %v127 = vshrl.u32 %v126, 7
    %v128 = vsub.s32 %v125, %v127
    %v129 = vrot.slane %v121, %v128
    %v131 = vunpack.c.l.s4 1966171168
    %v132 = vunpack.c.0.s8 %v131
    %v133 = vlaneseq
    %v134 = vshrl.u32 %v133, 7
    %v135 = vsub.s32 %v132, %v134
    %v136 = vrot.slane %v122, %v135
    %v137 = vcombine.high %v129, %v129
    %v138 = vcombine.high %v136, %v136
    %v207 = vunpack.c.l.b16 %v43
    %v208 = vunpack.c.l.b16 %v44
    %v209 = vunpack.c.l.b16 %v45
    %v210 = vunpack.c.l.b16 %v46
    %v211 = vunpack.c.l.b16 %v47
    %v212 = vunpack.c.l.b16 %v48
    %v213 = vunpack.c.l.b16 %v49
    %v214 = vunpack.c.l.b16 %v50
    %v215 = vunpack.c.l.b16 %v51
    %v216 = vunpack.c.l.b16 %v52
    %v217 = vunpack.c.l.b16 %v53
    %v218 = vunpack.c.l.b16 %v54
    %v219 = vunpack.c.l.b16 %v55
    %v220 = vunpack.c.l.b16 %v56
    %v221 = vunpack.c.l.b16 %v57
    %v222 = vunpack.c.l.b16 %v58
    %v223 = vunpack.c.l.b16 %v59
    %v224 = vunpack.c.l.b16 %v60
    %v225 = vunpack.c.l.b16 %v61
    %v226 = vunpack.c.l.b16 %v62
    %v227 = vunpack.c.l.b16 %v63
    %v228 = vunpack.c.l.b16 %v64
    %v229 = vunpack.c.l.b16 %v65
    %v230 = vunpack.c.l.b16 %v66
    %v231 = vunpack.c.l.b16 %v67
    %v232 = vunpack.c.l.b16 %v68
    %v233 = vunpack.c.l.b16 %v69
    %v234 = vunpack.c.l.b16 %v70
    %v235 = vunpack.c.l.b16 %v71
    %v236 = vunpack.c.l.b16 %v72
    %v237 = vunpack.c.l.b16 %v73
    %v238 = vunpack.c.l.b16 %v74
    %v239 = vunpack.c.l.b16 %v75
    %v240 = vunpack.c.l.b16 %v76
    %v241 = vunpack.c.l.b16 %v77
    %v242 = vunpack.c.l.b16 %v78
    %v243 = vunpack.c.l.b16 %v79
    %v244 = vunpack.c.l.b16 %v80
    %v245 = vunpack.c.l.b16 %v81
    %v246 = vunpack.c.l.b16 %v82
    %v247 = vunpack.c.l.b16 %v83
    %v248 = vunpack.c.l.b16 %v84
    %v249 = vunpack.c.l.b16 %v85
    %v250 = vunpack.c.l.b16 %v86
    %v251 = vunpack.c.l.b16 %v87
    %v252 = vunpack.c.l.b16 %v88
    %v253 = vunpack.c.l.b16 %v89
    %v254 = vunpack.c.l.b16 %v90
    %v255 = vunpack.c.l.b16 %v91
    %v256 = vunpack.c.l.b16 %v92
    %v257 = vunpack.c.l.b16 %v93
    %v258 = vunpack.c.l.b16 %v94
    %v259 = vunpack.c.l.b16 %v95
    %v260 = vunpack.c.l.b16 %v96
    %v261 = vunpack.c.l.b16 %v97
    %v262 = vunpack.c.l.b16 %v98
    %v263 = vunpack.c.l.b16 %v99
    %v264 = vunpack.c.l.b16 %v100
    %v265 = vunpack.c.l.b16 %v101
    %v266 = vunpack.c.l.b16 %v102
    %v267 = vunpack.c.l.b16 %v103
    %v268 = vunpack.c.l.b16 %v104
    %v269 = vunpack.c.l.b16 %v105
    %v270 = vunpack.c.l.b16 %v106
    %v271 = vpack.c.b16 %v208, %v207
    %v272 = vpack.c.b16 %v210, %v209
    %v273 = vpack.c.b16 %v212, %v211
    %v274 = vpack.c.b16 %v214, %v213
    %v275 = vpack.c.b16 %v216, %v215
    %v276 = vpack.c.b16 %v218, %v217
    %v277 = vpack.c.b16 %v220, %v219
    %v278 = vpack.c.b16 %v222, %v221
    %v279 = vpack.c.b16 %v224, %v223
    %v280 = vpack.c.b16 %v226, %v225
    %v281 = vpack.c.b16 %v228, %v227
    %v282 = vpack.c.b16 %v230, %v229
    %v283 = vpack.c.b16 %v232, %v231
    %v284 = vpack.c.b16 %v234, %v233
    %v285 = vpack.c.b16 %v236, %v235
    %v286 = vpack.c.b16 %v238, %v237
    %v287 = vpack.c.b16 %v240, %v239
    %v288 = vpack.c.b16 %v242, %v241
    %v289 = vpack.c.b16 %v244, %v243
    %v290 = vpack.c.b16 %v246, %v245
    %v291 = vpack.c.b16 %v248, %v247
    %v292 = vpack.c.b16 %v250, %v249
    %v293 = vpack.c.b16 %v252, %v251
    %v294 = vpack.c.b16 %v254, %v253
    %v295 = vpack.c.b16 %v256, %v255
    %v296 = vpack.c.b16 %v258, %v257
    %v297 = vpack.c.b16 %v260, %v259
    %v298 = vpack.c.b16 %v262, %v261
    %v299 = vpack.c.b16 %v264, %v263
    %v300 = vpack.c.b16 %v266, %v265
    %v301 = vpack.c.b16 %v268, %v267
    %v302 = vpack.c.b16 %v270, %v269
    %335 = vmatprep.subr.bf16.mxu0 0
    %336 = vmatpush1.bf16.msra.mxu0 %v271
    %337 = vmatprep.subr.bf16.mxu0 0
    %338 = vmatpush1.bf16.msra.mxu0 %v272
    %339 = vmatprep.subr.bf16.mxu0 0
    %340 = vmatpush1.bf16.msra.mxu0 %v273
    %341 = vmatprep.subr.bf16.mxu0 0
    %342 = vmatpush1.bf16.msra.mxu0 %v274
    %343 = vmatprep.subr.bf16.mxu0 0
    %344 = vmatpush1.bf16.msra.mxu0 %v275
    %345 = vmatprep.subr.bf16.mxu0 0
    %346 = vmatpush1.bf16.msra.mxu0 %v276
    %347 = vmatprep.subr.bf16.mxu0 0
    %348 = vmatpush1.bf16.msra.mxu0 %v277
    %349 = vmatprep.subr.bf16.mxu0 0
    %350 = vmatpush1.bf16.msra.mxu0 %v278
    %351 = vmatprep.subr.bf16.mxu0 0
    %352 = vmatpush1.bf16.msra.mxu0 %v279
    %353 = vmatprep.subr.bf16.mxu0 0
    %354 = vmatpush1.bf16.msra.mxu0 %v280
    %355 = vmatprep.subr.bf16.mxu0 0
    %356 = vmatpush1.bf16.msra.mxu0 %v281
    %357 = vmatprep.subr.bf16.mxu0 0
    %358 = vmatpush1.bf16.msra.mxu0 %v282
    %359 = vmatprep.subr.bf16.mxu0 0
    %360 = vmatpush1.bf16.msra.mxu0 %v283
    %361 = vmatprep.subr.bf16.mxu0 0
    %362 = vmatpush1.bf16.msra.mxu0 %v284
    %363 = vmatprep.subr.bf16.mxu0 0
    %364 = vmatpush1.bf16.msra.mxu0 %v285
    %365 = vmatprep.subr.bf16.mxu0 0
    %366 = vmatpush1.bf16.msra.mxu0 %v286
    %367 = vmatprep.mubr.bf16.mxu0 %v136
    %368 = vmatmul.mubr.bf16.gmra.mrb[0].mxu0 %v129
    %v369 = vpop.f32.mrb[0].mxu0
    %v370 = vadd.f32 %v112, %v369
    %v371 = vpop.f32.mrb[0].mxu0
    %v372 = vpop.f32.mrb[0].mxu0
    %v373 = vpop.f32.mrb[0].mxu0
    %374 = vdwg.mxu0
    %375 = vmatprep.subr.bf16.mxu0 0
    %376 = vmatpush1.bf16.msra.mxu0 %v287
    %377 = vmatprep.subr.bf16.mxu0 0
    %378 = vmatpush1.bf16.msra.mxu0 %v288
    %379 = vmatprep.subr.bf16.mxu0 0
    %380 = vmatpush1.bf16.msra.mxu0 %v289
    %381 = vmatprep.subr.bf16.mxu0 0
    %382 = vmatpush1.bf16.msra.mxu0 %v290
    %383 = vmatprep.subr.bf16.mxu0 0
    %384 = vmatpush1.bf16.msra.mxu0 %v291
    %385 = vmatprep.subr.bf16.mxu0 0
    %386 = vmatpush1.bf16.msra.mxu0 %v292
    %387 = vmatprep.subr.bf16.mxu0 0
    %388 = vmatpush1.bf16.msra.mxu0 %v293
    %389 = vmatprep.subr.bf16.mxu0 0
    %390 = vmatpush1.bf16.msra.mxu0 %v294
    %391 = vmatprep.subr.bf16.mxu0 0
    %392 = vmatpush1.bf16.msra.mxu0 %v295
    %393 = vmatprep.subr.bf16.mxu0 0
    %394 = vmatpush1.bf16.msra.mxu0 %v296
    %395 = vmatprep.subr.bf16.mxu0 0
    %396 = vmatpush1.bf16.msra.mxu0 %v297
    %397 = vmatprep.subr.bf16.mxu0 0
    %398 = vmatpush1.bf16.msra.mxu0 %v298
    %399 = vmatprep.subr.bf16.mxu0 0
    %400 = vmatpush1.bf16.msra.mxu0 %v299
    %401 = vmatprep.subr.bf16.mxu0 0
    %402 = vmatpush1.bf16.msra.mxu0 %v300
    %403 = vmatprep.subr.bf16.mxu0 0
    %404 = vmatpush1.bf16.msra.mxu0 %v301
    %405 = vmatprep.subr.bf16.mxu0 0
    %406 = vmatpush1.bf16.msra.mxu0 %v302
    %407 = vmatprep.mubr.bf16.mxu0 %v138
    %408 = vmatmul.mubr.bf16.gmra.mrb[0].mxu0 %v137
    %v409 = vpop.f32.mrb[0].mxu0
    %v410 = vadd.f32 %v370, %v409
    %v411 = vpop.f32.mrb[0].mxu0
    %v412 = vpop.f32.mrb[0].mxu0
    %v413 = vpop.f32.mrb[0].mxu0
    %414 = vdwg.mxu0
    %415 = vst [vmem:[#allocation7] sm:$0x3] %v410
    // Predicated region
    $region22: #{tpu_custom_call.1} parent=1 // pred_check
      _
    $region23: #{tpu_custom_call.1} parent=1 // pred_check_branch
      %417 = sbr.rel (0) target = $region25
    $region24: #{tpu_custom_call.1} parent=1 // pred_region
      %s419 = ssub.s32 32, 32
      %420 = vsyncadd [#allocation4], %s419
      %s422 = sshll.u32 [#allocation7], 4
      %s423 = int_to_ptr.vmem [resolvable:$true] %s422
      %425 = dma.vmem_to_hbm [thread:$0]  %s423, 32, %s3, [#allocation4]
    $region25: #{tpu_custom_call.1} parent=1 // pred_fallthru
      _
    // Predicated region
    $region26: #{tpu_custom_call.1} parent=1 // pred_check
      _
    $region27: #{tpu_custom_call.1} parent=1 // pred_check_branch
      %427 = sbr.rel (0) target = $region29
    $region28: #{tpu_custom_call.1} parent=1 // pred_region
      %428 = dma.done [#allocation4], 32
    $region29: #{tpu_custom_call.1} parent=1 // pred_fallthru
      _
    %429 = vsyncpa [#allocation3], 1
    %430 = vsyncpa [#allocation6], 1
    %431 = vsyncpa [#allocation4], 1

</llo_original>
